<compile_context>
chip_gen: v5e
topology: v5e:2x2
jax: 0.10.0
libtpu: 0.0.40
codegen_flags: <defaults>
</compile_context>

<pallas_src>
import functools
import math

import jax
import jax.numpy as jnp
import numpy as np
from jax.experimental import pallas as pl
from jax.experimental.pallas import tpu as pltpu


# ----------------------------------------------------------------------------
# Fused ResBlock1D Pallas kernel
# ----------------------------------------------------------------------------
def _resblock1d_kernel(x_ref, w1_ref, s1_ref, b1_ref, w2_ref, s2_ref, b2_ref,
                       o_ref):
    bb, L, C = x_ref.shape
    x = x_ref[...].astype(jnp.float32)               # (bb, L, C), VMEM-resident

    def conv_bn_relu(h, w_ref, s_ref, b_ref):
        # Reflect 'same' padding (pad=1) built from the resident tile:
        #   left[v]  = h[reflect(v-1)]  (row 0 -> row 1)
        #   right[v] = h[reflect(v+1)]  (row L-1 -> row L-2)
        left = jnp.concatenate([h[:, 1:2, :], h[:, :L - 1, :]], axis=1)
        right = jnp.concatenate([h[:, 1:, :], h[:, L - 2:L - 1, :]], axis=1)
        cols = jnp.concatenate([left, h, right], axis=-1)     # (bb, L, 3C)
        # Single im2col matmul on the MXU (contraction 3*C).
        y = jnp.dot(cols.reshape(bb * L, 3 * C), w_ref[...],
                    preferred_element_type=jnp.float32).reshape(bb, L, C)
        # Folded BatchNorm (eval mode) + conv bias, then ReLU -- fp32 on VPU.
        y = y * s_ref[...] + b_ref[...]
        return jnp.maximum(y, 0.0)

    h = conv_bn_relu(x, w1_ref, s1_ref, b1_ref)
    y = conv_bn_relu(h, w2_ref, s2_ref, b2_ref)
    o_ref[...] = (y + x).astype(o_ref.dtype)          # residual add (post-ReLU)


def _two_tensorcores_per_chip():
    # v7x has 2 TensorCores per chip -> use a 2-wide parallel batch grid there.
    try:
        return "v7" in jax.devices()[0].device_kind.lower()
    except Exception:
        return False


def res_block1d_pallas(x_blc, w1f, s1, b1, w2f, s2, b2, *, batch_grid=None):
    """Fused ResBlock1D.  x_blc: (B, L, C) f32; w*f: (3*C, C); s*/b*: (1, C)."""
    B, L, C = x_blc.shape
    if batch_grid is None:
        batch_grid = _two_tensorcores_per_chip() and B > 1
    grid_b = B if batch_grid else 1       # v5e/v6e: fold B into matmul rows
    bb = B // grid_b                      # rows of the batch per grid step

    x_spec = pl.BlockSpec((bb, L, C), lambda i: (i, 0, 0))
    w_spec = pl.BlockSpec((3 * C, C), lambda i: (0, 0))
    v_spec = pl.BlockSpec((1, C), lambda i: (0, 0))

    return pl.pallas_call(
        _resblock1d_kernel,
        out_shape=jax.ShapeDtypeStruct((B, L, C), jnp.float32),
        grid=(grid_b,),
        in_specs=[x_spec, w_spec, v_spec, v_spec, w_spec, v_spec, v_spec],
        out_specs=x_spec,
        compiler_params=pltpu.CompilerParams(
            dimension_semantics=("parallel",)),
    )(x_blc, w1f, s1, b1, w2f, s2, b2)


# ----------------------------------------------------------------------------
# Pure-JAX reference (same math, used only for a correctness check)
# ----------------------------------------------------------------------------
def res_block1d_ref(x_blc, w1, s1, b1, w2, s2, b2):
    """w1/w2: (K, Cin, Cout) un-flattened conv weights."""
    def conv_bn_relu(h, w, s, b):
        K = w.shape[0]
        L = h.shape[1]
        hp = jnp.pad(h, ((0, 0), (1, 1), (0, 0)), mode="reflect")
        y = sum(jnp.einsum("blc,co->blo", hp[:, k:k + L, :], w[k],
                           precision=jax.lax.Precision.HIGHEST)
                for k in range(K))
        return jnp.maximum(y * s + b, 0.0)

    h = conv_bn_relu(x_blc, w1, s1, b1)
    y = conv_bn_relu(h, w2, s2, b2)
    return y + x_blc


# ----------------------------------------------------------------------------
# Deterministic synthetic parameters (weight-norm / BatchNorm folded)
# ----------------------------------------------------------------------------
def make_conv_params(key, cin, cout, K, weight_norm=True):
    k1, k2, k3 = jax.random.split(key, 3)
    v = jax.random.normal(k1, (cout, cin, K), jnp.float32) / math.sqrt(cin * K)
    b = 0.01 * jax.random.normal(k2, (cout,), jnp.float32)
    if weight_norm:
        # nn.utils.weight_norm (dim=0): w = g * v / ||v||, folded statically.
        g = 1.0 + 0.1 * jax.random.normal(k3, (cout,), jnp.float32)
        norm = jnp.sqrt(jnp.sum(v * v, axis=(1, 2), keepdims=True))
        w = g[:, None, None] * v / norm
    else:
        w = v
    return jnp.transpose(w, (2, 1, 0)), b        # (K, Cin, Cout), (Cout,)


def make_bn_params(key, c):
    k1, k2, k3, k4 = jax.random.split(key, 4)
    gamma = 1.0 + 0.1 * jax.random.normal(k1, (c,), jnp.float32)
    beta = 0.1 * jax.random.normal(k2, (c,), jnp.float32)
    mean = 0.1 * jax.random.normal(k3, (c,), jnp.float32)
    var = 1.0 + 0.1 * jax.random.uniform(k4, (c,), jnp.float32)
    return gamma, beta, mean, var


def fold_bn(bias, bn, eps=1e-5):
    # TODO(synk): BatchNorm reproduced in eval (running-stats) mode only;
    # training-mode batch statistics are not modeled.
    if bn is None:
        return jnp.ones_like(bias), bias
    gamma, beta, mean, var = bn
    scale = gamma / jnp.sqrt(var + eps)
    shift = beta - mean * scale + bias * scale
    return scale, shift


# ----------------------------------------------------------------------------
# ResBlock1D wrapper (eval mode, matches the PyTorch forward:
#   relu(bn2(conv2(relu(bn1(conv1(x)))))) + x )
# ----------------------------------------------------------------------------
class ResBlock1DPallas:
    def __init__(self, key, dim, batch_norm=True, weight_norm=True):
        self.dim = dim
        k1, k2, k3, k4 = jax.random.split(key, 4)
        w1, bias1 = make_conv_params(k1, dim, dim, 3, weight_norm)
        w2, bias2 = make_conv_params(k2, dim, dim, 3, weight_norm)
        bn1 = make_bn_params(k3, dim) if batch_norm else None
        bn2 = make_bn_params(k4, dim) if batch_norm else None
        s1, sh1 = fold_bn(bias1, bn1)
        s2, sh2 = fold_bn(bias2, bn2)
        self.w1, self.w2 = w1, w2                      # (3, Cin, Cout)
        self.w1f = w1.reshape(3 * dim, dim)            # im2col-flattened
        self.w2f = w2.reshape(3 * dim, dim)
        self.s1 = s1.reshape(1, dim)
        self.sh1 = sh1.reshape(1, dim)
        self.s2 = s2.reshape(1, dim)
        self.sh2 = sh2.reshape(1, dim)

    def forward(self, x_ncw, use_pallas=True):
        # PyTorch layout (B, C, L) -> (B, L, C): channels on lanes.
        x = jnp.transpose(x_ncw, (0, 2, 1)).astype(jnp.float32)
        if use_pallas:
            y = res_block1d_pallas(x, self.w1f, self.s1, self.sh1,
                                   self.w2f, self.s2, self.sh2)
        else:
            y = res_block1d_ref(x, self.w1, self.s1, self.sh1,
                                self.w2, self.s2, self.sh2)
        return jnp.transpose(y, (0, 2, 1))             # back to (B, C, L)


# ----------------------------------------------------------------------------
if __name__ == "__main__":
    key = jax.random.PRNGKey(0)
    kp, kx = jax.random.split(key)

    # Shapes consistent with how ResBlock1D is used inside ConvAutoDecoder:
    # dim = hidden channels, L = vox_reso spatial axis.
    B, dim, L = 2, 32, 8
    block = ResBlock1DPallas(kp, dim, batch_norm=True, weight_norm=True)
    x = jax.random.normal(kx, (B, dim, L), jnp.float32)    # PyTorch NCW input

    out = jax.block_until_ready(block.forward(x, use_pallas=True))
    assert out.shape == (B, dim, L)

    ref = block.forward(x, use_pallas=False)
    np.testing.assert_allclose(np.asarray(out), np.asarray(ref),
                               rtol=2e-3, atol=2e-3)
    print("KERNEL_OK")
</pallas_src>

<mosaic_0001>
module attributes {stable_mosaic.version = 11 : i64} {
  func.func @_resblock1d_kernel(%arg0: i32, %arg1: memref<2x8x32xf32, #tpu.memory_space<vmem>>, %arg2: memref<96x32xf32, #tpu.memory_space<vmem>>, %arg3: memref<1x32xf32, #tpu.memory_space<vmem>>, %arg4: memref<1x32xf32, #tpu.memory_space<vmem>>, %arg5: memref<96x32xf32, #tpu.memory_space<vmem>>, %arg6: memref<1x32xf32, #tpu.memory_space<vmem>>, %arg7: memref<1x32xf32, #tpu.memory_space<vmem>>, %arg8: memref<2x8x32xf32, #tpu.memory_space<vmem>>) attributes {dimension_semantics = [#tpu.dimension_semantics<parallel>], iteration_bounds = array<i64: 1>, scalar_prefetch = 0 : i64, scratch_operands = 0 : i64, tpu.core_type = #tpu.core_type<tc>, window_params = [{transform_indices = @transform_0, window_bounds = array<i64: 2, 8, 32>}, {pipeline_mode = #tpu.pipeline_mode<synchronous>, transform_indices = @transform_1, window_bounds = array<i64: 96, 32>}, {pipeline_mode = #tpu.pipeline_mode<synchronous>, transform_indices = @transform_2, window_bounds = array<i64: 1, 32>}, {pipeline_mode = #tpu.pipeline_mode<synchronous>, transform_indices = @transform_3, window_bounds = array<i64: 1, 32>}, {pipeline_mode = #tpu.pipeline_mode<synchronous>, transform_indices = @transform_4, window_bounds = array<i64: 96, 32>}, {pipeline_mode = #tpu.pipeline_mode<synchronous>, transform_indices = @transform_5, window_bounds = array<i64: 1, 32>}, {pipeline_mode = #tpu.pipeline_mode<synchronous>, transform_indices = @transform_6, window_bounds = array<i64: 1, 32>}, {transform_indices = @transform_7, window_bounds = array<i64: 2, 8, 32>}]} {
    %c0 = arith.constant 0 : index
    %c0_0 = arith.constant 0 : index
    %c0_1 = arith.constant 0 : index
    %0 = vector.load %arg1[%c0, %c0_0, %c0_1] : memref<2x8x32xf32, #tpu.memory_space<vmem>>, vector<2x8x32xf32>
    %1 = vector.extract_strided_slice %0 {offsets = [0, 1, 0], sizes = [2, 1, 32], strides = [1, 1, 1]} : vector<2x8x32xf32> to vector<2x1x32xf32>
    %2 = vector.extract_strided_slice %0 {offsets = [0, 0, 0], sizes = [2, 7, 32], strides = [1, 1, 1]} : vector<2x8x32xf32> to vector<2x7x32xf32>
    %3 = tpu.concatenate %1, %2 in 1 : vector<2x1x32xf32>, vector<2x7x32xf32> -> vector<2x8x32xf32>
    %4 = vector.extract_strided_slice %0 {offsets = [0, 1, 0], sizes = [2, 7, 32], strides = [1, 1, 1]} : vector<2x8x32xf32> to vector<2x7x32xf32>
    %5 = vector.extract_strided_slice %0 {offsets = [0, 6, 0], sizes = [2, 1, 32], strides = [1, 1, 1]} : vector<2x8x32xf32> to vector<2x1x32xf32>
    %6 = tpu.concatenate %4, %5 in 1 : vector<2x7x32xf32>, vector<2x1x32xf32> -> vector<2x8x32xf32>
    %7 = tpu.concatenate %3, %0, %6 in 2 : vector<2x8x32xf32>, vector<2x8x32xf32>, vector<2x8x32xf32> -> vector<2x8x96xf32>
    %8 = vector.shape_cast %7 : vector<2x8x96xf32> to vector<16x96xf32>
    %c0_2 = arith.constant 0 : index
    %c0_3 = arith.constant 0 : index
    %9 = vector.load %arg2[%c0_2, %c0_3] : memref<96x32xf32, #tpu.memory_space<vmem>>, vector<96x32xf32>
    %cst = arith.constant dense<0.000000e+00> : vector<16x32xf32>
    %10 = tpu.matmul %8, %9, %cst {dimension_numbers = #tpu.dot_dimension_numbers<[1], [0], [0], [1], [0, 0, 1, 1], [], []>} : vector<16x96xf32>, vector<96x32xf32>, vector<16x32xf32> -> vector<16x32xf32>
    %11 = vector.shape_cast %10 : vector<16x32xf32> to vector<2x8x32xf32>
    %c0_4 = arith.constant 0 : index
    %c0_5 = arith.constant 0 : index
    %12 = vector.load %arg3[%c0_4, %c0_5] : memref<1x32xf32, #tpu.memory_space<vmem>>, vector<1x32xf32>
    %13 = vector.shape_cast %12 : vector<1x32xf32> to vector<1x1x32xf32>
    %14 = vector.broadcast %13 : vector<1x1x32xf32> to vector<2x8x32xf32>
    %15 = arith.mulf %11, %14 : vector<2x8x32xf32>
    %c0_6 = arith.constant 0 : index
    %c0_7 = arith.constant 0 : index
    %16 = vector.load %arg4[%c0_6, %c0_7] : memref<1x32xf32, #tpu.memory_space<vmem>>, vector<1x32xf32>
    %17 = vector.shape_cast %16 : vector<1x32xf32> to vector<1x1x32xf32>
    %18 = vector.broadcast %17 : vector<1x1x32xf32> to vector<2x8x32xf32>
    %19 = arith.addf %15, %18 : vector<2x8x32xf32>
    %cst_8 = arith.constant 0.000000e+00 : f32
    %20 = vector.broadcast %cst_8 : f32 to vector<2x8x32xf32>
    %21 = arith.maximumf %19, %20 : vector<2x8x32xf32>
    %22 = vector.extract_strided_slice %21 {offsets = [0, 1, 0], sizes = [2, 1, 32], strides = [1, 1, 1]} : vector<2x8x32xf32> to vector<2x1x32xf32>
    %23 = vector.extract_strided_slice %21 {offsets = [0, 0, 0], sizes = [2, 7, 32], strides = [1, 1, 1]} : vector<2x8x32xf32> to vector<2x7x32xf32>
    %24 = tpu.concatenate %22, %23 in 1 : vector<2x1x32xf32>, vector<2x7x32xf32> -> vector<2x8x32xf32>
    %25 = vector.extract_strided_slice %21 {offsets = [0, 1, 0], sizes = [2, 7, 32], strides = [1, 1, 1]} : vector<2x8x32xf32> to vector<2x7x32xf32>
    %26 = vector.extract_strided_slice %21 {offsets = [0, 6, 0], sizes = [2, 1, 32], strides = [1, 1, 1]} : vector<2x8x32xf32> to vector<2x1x32xf32>
    %27 = tpu.concatenate %25, %26 in 1 : vector<2x7x32xf32>, vector<2x1x32xf32> -> vector<2x8x32xf32>
    %28 = tpu.concatenate %24, %21, %27 in 2 : vector<2x8x32xf32>, vector<2x8x32xf32>, vector<2x8x32xf32> -> vector<2x8x96xf32>
    %29 = vector.shape_cast %28 : vector<2x8x96xf32> to vector<16x96xf32>
    %c0_9 = arith.constant 0 : index
    %c0_10 = arith.constant 0 : index
    %30 = vector.load %arg5[%c0_9, %c0_10] : memref<96x32xf32, #tpu.memory_space<vmem>>, vector<96x32xf32>
    %cst_11 = arith.constant dense<0.000000e+00> : vector<16x32xf32>
    %31 = tpu.matmul %29, %30, %cst_11 {dimension_numbers = #tpu.dot_dimension_numbers<[1], [0], [0], [1], [0, 0, 1, 1], [], []>} : vector<16x96xf32>, vector<96x32xf32>, vector<16x32xf32> -> vector<16x32xf32>
    %32 = vector.shape_cast %31 : vector<16x32xf32> to vector<2x8x32xf32>
    %c0_12 = arith.constant 0 : index
    %c0_13 = arith.constant 0 : index
    %33 = vector.load %arg6[%c0_12, %c0_13] : memref<1x32xf32, #tpu.memory_space<vmem>>, vector<1x32xf32>
    %34 = vector.shape_cast %33 : vector<1x32xf32> to vector<1x1x32xf32>
    %35 = vector.broadcast %34 : vector<1x1x32xf32> to vector<2x8x32xf32>
    %36 = arith.mulf %32, %35 : vector<2x8x32xf32>
    %c0_14 = arith.constant 0 : index
    %c0_15 = arith.constant 0 : index
    %37 = vector.load %arg7[%c0_14, %c0_15] : memref<1x32xf32, #tpu.memory_space<vmem>>, vector<1x32xf32>
    %38 = vector.shape_cast %37 : vector<1x32xf32> to vector<1x1x32xf32>
    %39 = vector.broadcast %38 : vector<1x1x32xf32> to vector<2x8x32xf32>
    %40 = arith.addf %36, %39 : vector<2x8x32xf32>
    %cst_16 = arith.constant 0.000000e+00 : f32
    %41 = vector.broadcast %cst_16 : f32 to vector<2x8x32xf32>
    %42 = arith.maximumf %40, %41 : vector<2x8x32xf32>
    %43 = arith.addf %42, %0 : vector<2x8x32xf32>
    %c0_17 = arith.constant 0 : index
    %c0_18 = arith.constant 0 : index
    %c0_19 = arith.constant 0 : index
    %44 = vector.load %arg8[%c0_17, %c0_18, %c0_19] : memref<2x8x32xf32, #tpu.memory_space<vmem>>, vector<2x8x32xf32>
    tpu.vector_store %arg8[%c0_17, %c0_18, %c0_19], %43 {strides = array<i32>} : memref<2x8x32xf32, #tpu.memory_space<vmem>>, vector<2x8x32xf32>,
    return
  }
  func.func @transform_0(%arg0: i32) -> (i32, i32, i32) {
    %c0_i32 = arith.constant 0 : i32
    %c0_i32_0 = arith.constant 0 : i32
    %c0_i32_1 = arith.constant 0 : i32
    return %arg0, %c0_i32, %c0_i32_0 : i32, i32, i32
  }
  func.func @transform_1(%arg0: i32) -> (i32, i32) {
    %c0_i32 = arith.constant 0 : i32
    %c0_i32_0 = arith.constant 0 : i32
    %c0_i32_1 = arith.constant 0 : i32
    return %c0_i32, %c0_i32_0 : i32, i32
  }
  func.func @transform_2(%arg0: i32) -> (i32, i32) {
    %c0_i32 = arith.constant 0 : i32
    %c0_i32_0 = arith.constant 0 : i32
    %c0_i32_1 = arith.constant 0 : i32
    return %c0_i32, %c0_i32_0 : i32, i32
  }
  func.func @transform_3(%arg0: i32) -> (i32, i32) {
    %c0_i32 = arith.constant 0 : i32
    %c0_i32_0 = arith.constant 0 : i32
    %c0_i32_1 = arith.constant 0 : i32
    return %c0_i32, %c0_i32_0 : i32, i32
  }
  func.func @transform_4(%arg0: i32) -> (i32, i32) {
    %c0_i32 = arith.constant 0 : i32
    %c0_i32_0 = arith.constant 0 : i32
    %c0_i32_1 = arith.constant 0 : i32
    return %c0_i32, %c0_i32_0 : i32, i32
  }
  func.func @transform_5(%arg0: i32) -> (i32, i32) {
    %c0_i32 = arith.constant 0 : i32
    %c0_i32_0 = arith.constant 0 : i32
    %c0_i32_1 = arith.constant 0 : i32
    return %c0_i32, %c0_i32_0 : i32, i32
  }
  func.func @transform_6(%arg0: i32) -> (i32, i32) {
    %c0_i32 = arith.constant 0 : i32
    %c0_i32_0 = arith.constant 0 : i32
    %c0_i32_1 = arith.constant 0 : i32
    return %c0_i32, %c0_i32_0 : i32, i32
  }
  func.func @transform_7(%arg0: i32) -> (i32, i32, i32) {
    %c0_i32 = arith.constant 0 : i32
    %c0_i32_0 = arith.constant 0 : i32
    %c0_i32_1 = arith.constant 0 : i32
    return %arg0, %c0_i32, %c0_i32_0 : i32, i32, i32
  }
}

</mosaic_0001>

<llo_original>
// kernel: tpu_custom_call.1
$region0: #{tpu_custom_call.1}
  #allocation0 [shape = 'u32[]', space=smem, size = 0x4, offset = 0x4, fixed_abs, tag = 'smem constant byte address 0x4 - core index']
  #allocation1 [shape = 'u32[72,128]{1,0:T(1,128)}', space=vmem, size = 0x9000, scoped, tag = 'internal scratch']
  %s0 = inlined_call_operand.vmem [shape: f32[2,8,32], index: 0, kind: input, shape index: {}]
  %s1 = inlined_call_operand.vmem [shape: f32[96,32], index: 1, kind: input, shape index: {}]
  %s2 = inlined_call_operand.vmem [shape: f32[1,32], index: 2, kind: input, shape index: {}]
  %s3 = inlined_call_operand.vmem [shape: f32[1,32], index: 3, kind: input, shape index: {}]
  %s4 = inlined_call_operand.vmem [shape: f32[96,32], index: 4, kind: input, shape index: {}]
  %s5 = inlined_call_operand.vmem [shape: f32[1,32], index: 5, kind: input, shape index: {}]
  %s6 = inlined_call_operand.vmem [shape: f32[1,32], index: 6, kind: input, shape index: {}]
  %s7 = inlined_call_operand.hbm [shape: f32[2,8,32], index: 7, kind: output, shape index: {}]
  %s8 = sld [smem:[#allocation0]]
  $region38: #{tpu_custom_call.1} parent=0
    _
  %s10 = ssub.s32 1, %s8
  %s11 = scalar_select 0, %s10, %s8
  $region1: #{tpu_custom_call.1} parent=0
    #allocation2 [shape = 'u8[8192]{0}', space=vmem, size = 0x2000, scoped, tag = 'output window, operand 0, single buffered']
    #allocation3 [shape = 's32[1]{0}', space=sflag, size = 0x4, scoped, tag = 'scoped memory for tpu_custom_call.1']
    %12 = vsyncpa [#allocation3], 0
    // Predicated region
    $region2: #{tpu_custom_call.1} parent=1 // pred_check
      _
    $region3: #{tpu_custom_call.1} parent=1 // pred_check_branch
      %14 = sbr.rel (0) target = $region5
    $region4: #{tpu_custom_call.1} parent=1 // pred_region
      _
    $region5: #{tpu_custom_call.1} parent=1 // pred_fallthru
      _
    // Predicated region
    $region6: #{tpu_custom_call.1} parent=1 // pred_check
      _
    $region7: #{tpu_custom_call.1} parent=1 // pred_check_branch
      %16 = sbr.rel (0) target = $region9
    $region8: #{tpu_custom_call.1} parent=1 // pred_region
      _
    $region9: #{tpu_custom_call.1} parent=1 // pred_fallthru
      _
    // Predicated region
    $region10: #{tpu_custom_call.1} parent=1 // pred_check
      _
    $region11: #{tpu_custom_call.1} parent=1 // pred_check_branch
      %18 = sbr.rel (0) target = $region13
    $region12: #{tpu_custom_call.1} parent=1 // pred_region
      _
    $region13: #{tpu_custom_call.1} parent=1 // pred_fallthru
      _
    // Predicated region
    $region14: #{tpu_custom_call.1} parent=1 // pred_check
      _
    $region15: #{tpu_custom_call.1} parent=1 // pred_check_branch
      %20 = sbr.rel (0) target = $region17
    $region16: #{tpu_custom_call.1} parent=1 // pred_region
      _
    $region17: #{tpu_custom_call.1} parent=1 // pred_fallthru
      _
    // Predicated region
    $region18: #{tpu_custom_call.1} parent=1 // pred_check
      _
    $region19: #{tpu_custom_call.1} parent=1 // pred_check_branch
      %22 = sbr.rel (0) target = $region21
    $region20: #{tpu_custom_call.1} parent=1 // pred_region
      _
    $region21: #{tpu_custom_call.1} parent=1 // pred_fallthru
      _
    // Predicated region
    $region22: #{tpu_custom_call.1} parent=1 // pred_check
      _
    $region23: #{tpu_custom_call.1} parent=1 // pred_check_branch
      %24 = sbr.rel (0) target = $region25
    $region24: #{tpu_custom_call.1} parent=1 // pred_region
      _
    $region25: #{tpu_custom_call.1} parent=1 // pred_fallthru
      _
    // Predicated region
    $region26: #{tpu_custom_call.1} parent=1 // pred_check
      _
    $region27: #{tpu_custom_call.1} parent=1 // pred_check_branch
      %26 = sbr.rel (0) target = $region29
    $region28: #{tpu_custom_call.1} parent=1 // pred_region
      _
    $region29: #{tpu_custom_call.1} parent=1 // pred_fallthru
      _
    %v27 = vld [vmem:[%s0] sm:$0xff]
    %v28 = vld [vmem:[%s0 + $0x8] sm:$0xff]
    %v31 = vrot.slane %v27, 1
    %v32 = vrot.slane %v28, 1
    %v35 = vrot.slane %v27, 7
    %v36 = vrot.slane %v28, 7
    %vm39 = vcmask 1040384
    %v40 = vsel %vm39, %v31, %v35
    %v41 = vsel %vm39, %v32, %v36
    %vm42 = vcmask 1046528
    %v43 = vsel %vm42, %v31, %v35
    %v44 = vsel %vm42, %v32, %v36
    %45 = vrot.lane.b32.xlu0 %v27, 32
    %v46 = vpop.permute.xlu0 %45
    %47 = vrot.lane.b32.xlu0 %v28, 32
    %v48 = vpop.permute.xlu0 %47
    %53 = vrot.lane.b32.xlu0 %v43, 64
    %v54 = vpop.permute.xlu0 %53
    %55 = vrot.lane.b32.xlu0 %v44, 64
    %v56 = vpop.permute.xlu0 %55
    %vm59 = vcmask 261120
    %v60 = vsel %vm59, %v40, %v46
    %v61 = vsel %vm59, %v41, %v48
    %vm62 = vcmask 523264
    %v63 = vsel %vm62, %v60, %v54
    %v64 = vsel %vm62, %v61, %v56
    %v65 = vld [vmem:[%s1] sm:$0xff]
    %v66 = vld [vmem:[%s1 + $0x8] sm:$0xff]
    %v67 = vld [vmem:[%s1 + $0x10] sm:$0xff]
    %v68 = vld [vmem:[%s1 + $0x18] sm:$0xff]
    %v69 = vld [vmem:[%s1 + $0x20] sm:$0xff]
    %v70 = vld [vmem:[%s1 + $0x28] sm:$0xff]
    %v71 = vld [vmem:[%s1 + $0x30] sm:$0xff]
    %v72 = vld [vmem:[%s1 + $0x38] sm:$0xff]
    %v73 = vld [vmem:[%s1 + $0x40] sm:$0xff]
    %v74 = vld [vmem:[%s1 + $0x48] sm:$0xff]
    %v75 = vld [vmem:[%s1 + $0x50] sm:$0xff]
    %v76 = vld [vmem:[%s1 + $0x58] sm:$0xff]
    %vm77 = vcmask 785408
    %v79 = vsel %vm77, %v63, 0
    %v82 = vsel %vm77, %v64, 0
    %84 = vmatpush.msra.mxu0 0.0
    %85 = vmatpush.msra.mxu0 0.0
    %86 = vmatpush.msra.mxu0 0.0
    %87 = vmatpush.msra.mxu0 0.0
    %88 = vmatpush.msra.mxu0 %v76
    %89 = vmatpush.msra.mxu0 %v75
    %90 = vmatpush.msra.mxu0 %v74
    %91 = vmatpush.msra.mxu0 %v73
    %92 = vmatpush.msra.mxu0 %v72
    %93 = vmatpush.msra.mxu0 %v71
    %94 = vmatpush.msra.mxu0 %v70
    %95 = vmatpush.msra.mxu0 %v69
    %96 = vmatpush.msra.mxu0 %v68
    %97 = vmatpush.msra.mxu0 %v67
    %98 = vmatpush.msra.mxu0 %v66
    %99 = vmatpush.msra.mxu0 %v65
    %100 = vmatmul.f32.gmra.mxu0 %v79
    %v101 = vpop.f32.mrf.mxu0
    %v102 = vadd.f32 0.0, %v101
    %103 = vmatmul.f32.gmra.mxu0 %v82
    %v104 = vpop.f32.mrf.mxu0
    %v105 = vadd.f32 0.0, %v104
    %106 = vdwg.mxu0
    %v107 = vld [vmem:[%s2] sm:$0x1]
    %v109 = vperm.slane %v107, 0
    %v111 = vmul.f32 %v102, %v109
    %v112 = vmul.f32 %v105, %v109
    %v113 = vld [vmem:[%s3] sm:$0x1]
    %v115 = vperm.slane %v113, 0
    %v117 = vadd.f32 %v111, %v115
    %v118 = vadd.f32 %v112, %v115
    %v119 = vmax.f32 %v117, 0.0
    %v120 = vmax.f32 %v118, 0.0
    %v123 = vrot.slane %v119, 1
    %v124 = vrot.slane %v120, 1
    %v127 = vrot.slane %v119, 7
    %v128 = vrot.slane %v120, 7
    %v131 = vsel %vm39, %v123, %v127
    %v132 = vsel %vm39, %v124, %v128
    %v133 = vsel %vm42, %v123, %v127
    %v134 = vsel %vm42, %v124, %v128
    %135 = vrot.lane.b32.xlu0 %v119, 32
    %v136 = vpop.permute.xlu0 %135
    %137 = vrot.lane.b32.xlu0 %v120, 32
    %v138 = vpop.permute.xlu0 %137
    %143 = vrot.lane.b32.xlu0 %v133, 64
    %v144 = vpop.permute.xlu0 %143
    %145 = vrot.lane.b32.xlu0 %v134, 64
    %v146 = vpop.permute.xlu0 %145
    %v149 = vsel %vm59, %v131, %v136
    %v150 = vsel %vm59, %v132, %v138
    %v151 = vsel %vm62, %v149, %v144
    %v152 = vsel %vm62, %v150, %v146
    %v153 = vld [vmem:[%s4] sm:$0xff]
    %v154 = vld [vmem:[%s4 + $0x8] sm:$0xff]
    %v155 = vld [vmem:[%s4 + $0x10] sm:$0xff]
    %v156 = vld [vmem:[%s4 + $0x18] sm:$0xff]
    %v157 = vld [vmem:[%s4 + $0x20] sm:$0xff]
    %v158 = vld [vmem:[%s4 + $0x28] sm:$0xff]
    %v159 = vld [vmem:[%s4 + $0x30] sm:$0xff]
    %v160 = vld [vmem:[%s4 + $0x38] sm:$0xff]
    %v161 = vld [vmem:[%s4 + $0x40] sm:$0xff]
    %v162 = vld [vmem:[%s4 + $0x48] sm:$0xff]
    %v163 = vld [vmem:[%s4 + $0x50] sm:$0xff]
    %v164 = vld [vmem:[%s4 + $0x58] sm:$0xff]
    %v166 = vsel %vm77, %v151, 0
    %v169 = vsel %vm77, %v152, 0
    %171 = vmatpush.msra.mxu0 0.0
    %172 = vmatpush.msra.mxu0 0.0
    %173 = vmatpush.msra.mxu0 0.0
    %174 = vmatpush.msra.mxu0 0.0
    %175 = vmatpush.msra.mxu0 %v164
    %176 = vmatpush.msra.mxu0 %v163
    %177 = vmatpush.msra.mxu0 %v162
    %178 = vmatpush.msra.mxu0 %v161
    %179 = vmatpush.msra.mxu0 %v160
    %180 = vmatpush.msra.mxu0 %v159
    %181 = vmatpush.msra.mxu0 %v158
    %182 = vmatpush.msra.mxu0 %v157
    %183 = vmatpush.msra.mxu0 %v156
    %184 = vmatpush.msra.mxu0 %v155
    %185 = vmatpush.msra.mxu0 %v154
    %186 = vmatpush.msra.mxu0 %v153
    %187 = vmatmul.f32.gmra.mxu0 %v166
    %v188 = vpop.f32.mrf.mxu0
    %v189 = vadd.f32 0.0, %v188
    %190 = vmatmul.f32.gmra.mxu0 %v169
    %v191 = vpop.f32.mrf.mxu0
    %v192 = vadd.f32 0.0, %v191
    %193 = vdwg.mxu0
    %v194 = vld [vmem:[%s5] sm:$0x1]
    %v196 = vperm.slane %v194, 0
    %v198 = vmul.f32 %v189, %v196
    %v199 = vmul.f32 %v192, %v196
    %v200 = vld [vmem:[%s6] sm:$0x1]
    %v202 = vperm.slane %v200, 0
    %v204 = vadd.f32 %v198, %v202
    %v205 = vadd.f32 %v199, %v202
    %v206 = vmax.f32 %v204, 0.0
    %v207 = vmax.f32 %v205, 0.0
    %v208 = vadd.f32 %v206, %v27
    %v209 = vadd.f32 %v207, %v28
    %210 = vst.msk [vmem:[#allocation2] sm:$0xff] %vm59, %v208
    %211 = vst.msk [vmem:[#allocation2 + $0x8] sm:$0xff] %vm59, %v209
    // Predicated region
    $region30: #{tpu_custom_call.1} parent=1 // pred_check
      _
    $region31: #{tpu_custom_call.1} parent=1 // pred_check_branch
      %213 = sbr.rel (0) target = $region33
    $region32: #{tpu_custom_call.1} parent=1 // pred_region
      %215 = vsyncadd [#allocation3], 0
      %s216 = sshll.u32 [#allocation2], 4
      %s217 = int_to_ptr.vmem [resolvable:$true] %s216
      %s218 = sshll.u32 %s7, 4
      %s219 = int_to_ptr.hbm [resolvable:$true] %s218
      %224 = dma.vmem_to_hbm [thread:$0]  %s217, 256, %s219, [#allocation3], 128, 128, 8
    $region33: #{tpu_custom_call.1} parent=1 // pred_fallthru
      _
    // Predicated region
    $region34: #{tpu_custom_call.1} parent=1 // pred_check
      _
    $region35: #{tpu_custom_call.1} parent=1 // pred_check_branch
      %226 = sbr.rel (0) target = $region37
    $region36: #{tpu_custom_call.1} parent=1 // pred_region
      %228 = dma.done [#allocation3], 256
    $region37: #{tpu_custom_call.1} parent=1 // pred_fallthru
      _
    %229 = vsyncpa [#allocation3], 1

</llo_original>
